<compile_context>
chip_gen: v6e
topology: v6e:2x2x1
jax: 0.10.0
libtpu: 0.0.40
codegen_flags: <defaults>
</compile_context>

<pallas_src>
import math
import numpy as np
import jax
import jax.numpy as jnp
from jax.experimental import pallas as pl
from jax.experimental.pallas import tpu as pltpu

BN_EPS = 1e-5


# ----------------------------------------------------------------------------
# Pallas kernel: full _ResGraphConv forward on a (N, C) slab, N = B*J.
# ----------------------------------------------------------------------------
def _make_kernel(B, J, C, H):
    N = B * J

    def kernel(x_ref,
               d1_ref, a1_ref, w1_ref, b1_ref, g1_ref, be1_ref,
               d2_ref, a2_ref, w2_ref, b2_ref, g2_ref, be2_ref,
               o_ref):
        x = x_ref[...]                                        # (N, C) f32

        def sem_gconv(h, d_ref, a_ref, w_ref, b_ref, D):
            # Fused feature matmul: one (N, Cin) x (Cin, 2D) MXU dot (bf16 in, f32 acc).
            hh = jnp.dot(h.astype(jnp.bfloat16), w_ref[...],
                         preferred_element_type=jnp.float32)  # (N, 2D) f32
            h0 = hh[:, :D].reshape(B, J, D)                   # W0 branch (f32)
            h1 = hh[:, D:].reshape(B, J, D).astype(jnp.bfloat16)  # W1 branch
            # Off-diagonal graph aggregation: per-batch (J,J) @ (J,D), batched.
            adj = jnp.broadcast_to(a_ref[...], (B, J, J))     # bf16, tiny
            yo = jnp.einsum('bij,bjd->bid', adj, h1,
                            preferred_element_type=jnp.float32)
            # Diagonal part is a per-joint row-scale (VPU), no matmul.
            y = d_ref[...] * h0 + yo + b_ref[...]             # (B, J, D) f32
            return y.reshape(N, D)

        def bn_relu(y, g_ref, be_ref):
            # BatchNorm1d training mode: biased stats over all N rows,
            # one-pass sum / sum-of-squares.
            inv_n = 1.0 / y.shape[0]
            s1 = jnp.sum(y, axis=0, keepdims=True)
            s2 = jnp.sum(y * y, axis=0, keepdims=True)
            mean = s1 * inv_n
            var = jnp.maximum(s2 * inv_n - mean * mean, 0.0)
            yhat = (y - mean) * jax.lax.rsqrt(var + BN_EPS)
            return jnp.maximum(yhat * g_ref[...] + be_ref[...], 0.0)

        out1 = bn_relu(sem_gconv(x, d1_ref, a1_ref, w1_ref, b1_ref, H),
                       g1_ref, be1_ref)
        out2 = bn_relu(sem_gconv(out1, d2_ref, a2_ref, w2_ref, b2_ref, C),
                       g2_ref, be2_ref)

        o_ref[...] = x + out2                                 # residual add (f32)

    return kernel


def _full_spec(shape):
    return pl.BlockSpec(shape, lambda i: (0,) * len(shape))


def res_graph_conv_forward(x, params):
    """x: (B, J, Cin) float32. params: 12-tuple (6 per layer). Returns (B, J, Cin)."""
    B, J, C = x.shape
    H = params[2].shape[1] // 2        # layer-1 fused W is (C, 2H)
    N = B * J
    x_flat = x.reshape(N, C)

    ins = (x_flat,) + tuple(params)
    out_flat = pl.pallas_call(
        _make_kernel(B, J, C, H),
        out_shape=jax.ShapeDtypeStruct((N, C), jnp.float32),
        grid=(1,),
        in_specs=[_full_spec(a.shape) for a in ins],
        out_specs=_full_spec((N, C)),
        compiler_params=pltpu.CompilerParams(
            dimension_semantics=("arbitrary",),
            vmem_limit_bytes=32 * 1024 * 1024),
    )(*ins)
    return out_flat.reshape(B, J, C)


# ----------------------------------------------------------------------------
# Parameter construction (deterministic, synthetic) + param-only glue.
# ----------------------------------------------------------------------------
def build_adjacency(J):
    """Chain graph over J joints with self-loops (typical SemGCN adjacency)."""
    a = np.eye(J, dtype=np.float32)
    for i in range(J - 1):
        a[i, i + 1] = 1.0
        a[i + 1, i] = 1.0
    return a


def semgcn_softmax_adj(adj_mask_np, e):
    """adj[m] = e ; others = -9e15 ; softmax over dim=1 (matches SemGraphConv)."""
    rows, cols = np.nonzero(adj_mask_np)
    logits = jnp.full(adj_mask_np.shape, -9e15, dtype=jnp.float32)
    logits = logits.at[rows, cols].set(e)
    return jax.nn.softmax(logits, axis=1)


def make_layer_params(key, adj_mask_np, in_dim, out_dim):
    """One _GraphConv layer: (diag_scale, adj_off(bf16), W_cat(bf16), bias, gamma, beta)."""
    J = adj_mask_np.shape[0]
    nnz = int(adj_mask_np.sum())
    k_w, k_b, k_g, k_be = jax.random.split(key, 4)
    bound = 1.414 * math.sqrt(6.0 / (in_dim + out_dim))
    W = jax.random.uniform(k_w, (2, in_dim, out_dim), jnp.float32, -bound, bound)
    e = jnp.ones((nnz,), jnp.float32)                  # nn.init.constant_(e, 1)
    stdv = 1.0 / math.sqrt(out_dim)
    bias = jax.random.uniform(k_b, (out_dim,), jnp.float32, -stdv, stdv)
    gamma = 1.0 + 0.1 * jax.random.uniform(k_g, (out_dim,), jnp.float32, -1.0, 1.0)
    beta = 0.1 * jax.random.normal(k_be, (out_dim,), jnp.float32)

    adj_soft = semgcn_softmax_adj(adj_mask_np, e)      # (J, J) f32
    eye = jnp.eye(J, dtype=jnp.float32)
    diag = jnp.diag(adj_soft).reshape(J, 1)            # (softmax_adj * I) as a row-scale
    adj_off = (adj_soft * (1.0 - eye)).astype(jnp.bfloat16)
    w_cat = jnp.concatenate([W[0], W[1]], axis=1).astype(jnp.bfloat16)  # (in, 2*out)

    return (diag, adj_off, w_cat,
            bias.reshape(1, out_dim), gamma.reshape(1, out_dim), beta.reshape(1, out_dim))


# ----------------------------------------------------------------------------
# Pure-JAX reference (PyTorch semantics; same bf16 operand precision as kernel,
# but two-pass variance and un-fused structure for an independent check).
# ----------------------------------------------------------------------------
def ref_forward(x, params):
    B, J, C = x.shape

    def layer(h, p):
        d, a_off, w_cat, b, g, be = p
        D = w_cat.shape[1] // 2
        w0, w1 = w_cat[:, :D], w_cat[:, D:]
        h0 = jnp.einsum('bjc,cd->bjd', h.astype(jnp.bfloat16), w0,
                        preferred_element_type=jnp.float32)
        h1 = jnp.einsum('bjc,cd->bjd', h.astype(jnp.bfloat16), w1,
                        preferred_element_type=jnp.float32)
        yo = jnp.einsum('ij,bjd->bid', a_off, h1.astype(jnp.bfloat16),
                        preferred_element_type=jnp.float32)
        y = (d * h0 + yo + b).reshape(B * J, D)
        mean = y.mean(axis=0, keepdims=True)
        var = ((y - mean) ** 2).mean(axis=0, keepdims=True)
        out = jnp.maximum((y - mean) / jnp.sqrt(var + BN_EPS) * g + be, 0.0)
        return out.reshape(B, J, D)

    out = layer(layer(x, params[:6]), params[6:])
    return x + out


# TODO(synk): the module constructs nn.Dropout(p_dropout) but never applies it in
# the given forward(), so no dropout is implemented here; BN running-stat buffer
# updates (training side effect, not affecting the output) are not emitted.

if __name__ == "__main__":
    B, J = 2, 16
    IN_DIM = OUT_DIM = 32   # residual add requires input_dim == output_dim
    HID_DIM = 64

    key = jax.random.PRNGKey(0)
    kx, k1, k2 = jax.random.split(key, 3)

    adj_mask = build_adjacency(J) > 0
    p1 = make_layer_params(k1, adj_mask, IN_DIM, HID_DIM)    # gconv1 (+ its BN)
    p2 = make_layer_params(k2, adj_mask, HID_DIM, OUT_DIM)   # gconv2 (+ its BN)
    params = p1 + p2

    x = jax.random.normal(kx, (B, J, IN_DIM), jnp.float32)

    out = jax.block_until_ready(res_graph_conv_forward(x, params))
    ref = jax.block_until_ready(ref_forward(x, params))

    # Tolerance covers bf16 MXU operands (and the re-rounding of layer-1 output
    # to bf16 between layers); structural errors would be O(0.1-1).
    np.testing.assert_allclose(np.asarray(out), np.asarray(ref), rtol=2e-2, atol=2e-2)

    print("KERNEL_OK")
</pallas_src>

<mosaic_0001>
module attributes {stable_mosaic.version = 11 : i64} {
  func.func @kernel(%arg0: i32, %arg1: memref<32x32xf32, #tpu.memory_space<vmem>>, %arg2: memref<16x1xf32, #tpu.memory_space<vmem>>, %arg3: memref<16x16xbf16, #tpu.memory_space<vmem>>, %arg4: memref<32x128xbf16, #tpu.memory_space<vmem>>, %arg5: memref<1x64xf32, #tpu.memory_space<vmem>>, %arg6: memref<1x64xf32, #tpu.memory_space<vmem>>, %arg7: memref<1x64xf32, #tpu.memory_space<vmem>>, %arg8: memref<16x1xf32, #tpu.memory_space<vmem>>, %arg9: memref<16x16xbf16, #tpu.memory_space<vmem>>, %arg10: memref<64x64xbf16, #tpu.memory_space<vmem>>, %arg11: memref<1x32xf32, #tpu.memory_space<vmem>>, %arg12: memref<1x32xf32, #tpu.memory_space<vmem>>, %arg13: memref<1x32xf32, #tpu.memory_space<vmem>>, %arg14: memref<32x32xf32, #tpu.memory_space<vmem>>) attributes {dimension_semantics = [#tpu.dimension_semantics<arbitrary>], iteration_bounds = array<i64: 1>, scalar_prefetch = 0 : i64, scratch_operands = 0 : i64, tpu.core_type = #tpu.core_type<tc>, window_params = [{pipeline_mode = #tpu.pipeline_mode<synchronous>, transform_indices = @transform_0, window_bounds = array<i64: 32, 32>}, {pipeline_mode = #tpu.pipeline_mode<synchronous>, transform_indices = @transform_1, window_bounds = array<i64: 16, 1>}, {pipeline_mode = #tpu.pipeline_mode<synchronous>, transform_indices = @transform_2, window_bounds = array<i64: 16, 16>}, {pipeline_mode = #tpu.pipeline_mode<synchronous>, transform_indices = @transform_3, window_bounds = array<i64: 32, 128>}, {pipeline_mode = #tpu.pipeline_mode<synchronous>, transform_indices = @transform_4, window_bounds = array<i64: 1, 64>}, {pipeline_mode = #tpu.pipeline_mode<synchronous>, transform_indices = @transform_5, window_bounds = array<i64: 1, 64>}, {pipeline_mode = #tpu.pipeline_mode<synchronous>, transform_indices = @transform_6, window_bounds = array<i64: 1, 64>}, {pipeline_mode = #tpu.pipeline_mode<synchronous>, transform_indices = @transform_7, window_bounds = array<i64: 16, 1>}, {pipeline_mode = #tpu.pipeline_mode<synchronous>, transform_indices = @transform_8, window_bounds = array<i64: 16, 16>}, {pipeline_mode = #tpu.pipeline_mode<synchronous>, transform_indices = @transform_9, window_bounds = array<i64: 64, 64>}, {pipeline_mode = #tpu.pipeline_mode<synchronous>, transform_indices = @transform_10, window_bounds = array<i64: 1, 32>}, {pipeline_mode = #tpu.pipeline_mode<synchronous>, transform_indices = @transform_11, window_bounds = array<i64: 1, 32>}, {pipeline_mode = #tpu.pipeline_mode<synchronous>, transform_indices = @transform_12, window_bounds = array<i64: 1, 32>}, {pipeline_mode = #tpu.pipeline_mode<synchronous>, transform_indices = @transform_13, window_bounds = array<i64: 32, 32>}]} {
    %c0 = arith.constant 0 : index
    %c0_0 = arith.constant 0 : index
    %0 = vector.load %arg1[%c0, %c0_0] : memref<32x32xf32, #tpu.memory_space<vmem>>, vector<32x32xf32>
    %1 = arith.truncf %0 : vector<32x32xf32> to vector<32x32xbf16>
    %c0_1 = arith.constant 0 : index
    %c0_2 = arith.constant 0 : index
    %2 = vector.load %arg4[%c0_1, %c0_2] : memref<32x128xbf16, #tpu.memory_space<vmem>>, vector<32x128xbf16>
    %cst = arith.constant dense<0.000000e+00> : vector<32x128xf32>
    %3 = tpu.matmul %1, %2, %cst {dimension_numbers = #tpu.dot_dimension_numbers<[1], [0], [0], [1], [0, 0, 1, 1], [], []>} : vector<32x32xbf16>, vector<32x128xbf16>, vector<32x128xf32> -> vector<32x128xf32>
    %4 = vector.extract_strided_slice %3 {offsets = [0, 0], sizes = [32, 64], strides = [1, 1]} : vector<32x128xf32> to vector<32x64xf32>
    %5 = vector.shape_cast %4 : vector<32x64xf32> to vector<2x16x64xf32>
    %6 = vector.extract_strided_slice %3 {offsets = [0, 64], sizes = [32, 64], strides = [1, 1]} : vector<32x128xf32> to vector<32x64xf32>
    %7 = vector.shape_cast %6 : vector<32x64xf32> to vector<2x16x64xf32>
    %8 = arith.truncf %7 : vector<2x16x64xf32> to vector<2x16x64xbf16>
    %c0_3 = arith.constant 0 : index
    %c0_4 = arith.constant 0 : index
    %9 = vector.load %arg3[%c0_3, %c0_4] : memref<16x16xbf16, #tpu.memory_space<vmem>>, vector<16x16xbf16>
    %10 = vector.shape_cast %9 : vector<16x16xbf16> to vector<1x16x16xbf16>
    %11 = vector.broadcast %10 : vector<1x16x16xbf16> to vector<2x16x16xbf16>
    "tpu.trace_start"() <{level = 10 : i32, message = "bij,bjd->bid"}> : () -> ()
    %cst_5 = arith.constant dense<0.000000e+00> : vector<2x16x64xf32>
    %12 = tpu.matmul %11, %8, %cst_5 {dimension_numbers = #tpu.dot_dimension_numbers<[2], [1], [1], [2], [0, 0, 0, 1, 1, 2], [0], [0]>} : vector<2x16x16xbf16>, vector<2x16x64xbf16>, vector<2x16x64xf32> -> vector<2x16x64xf32>
    "tpu.trace_stop"() : () -> ()
    %c0_6 = arith.constant 0 : index
    %c0_7 = arith.constant 0 : index
    %13 = vector.load %arg2[%c0_6, %c0_7] : memref<16x1xf32, #tpu.memory_space<vmem>>, vector<16x1xf32>
    %14 = vector.shape_cast %13 : vector<16x1xf32> to vector<1x16x1xf32>
    %15 = vector.broadcast %14 : vector<1x16x1xf32> to vector<2x16x64xf32>
    %16 = arith.mulf %15, %5 : vector<2x16x64xf32>
    %17 = arith.addf %16, %12 : vector<2x16x64xf32>
    %c0_8 = arith.constant 0 : index
    %c0_9 = arith.constant 0 : index
    %18 = vector.load %arg5[%c0_8, %c0_9] : memref<1x64xf32, #tpu.memory_space<vmem>>, vector<1x64xf32>
    %19 = vector.shape_cast %18 : vector<1x64xf32> to vector<1x1x64xf32>
    %20 = vector.broadcast %19 : vector<1x1x64xf32> to vector<2x16x64xf32>
    %21 = arith.addf %17, %20 : vector<2x16x64xf32>
    %22 = vector.shape_cast %21 : vector<2x16x64xf32> to vector<32x64xf32>
    %cst_10 = arith.constant dense<0.000000e+00> : vector<64xf32>
    %23 = vector.multi_reduction <add>, %22, %cst_10 [0] : vector<32x64xf32> to vector<64xf32>
    %24 = vector.shape_cast %23 : vector<64xf32> to vector<1x64xf32>
    %25 = arith.mulf %22, %22 : vector<32x64xf32>
    %cst_11 = arith.constant dense<0.000000e+00> : vector<64xf32>
    %26 = vector.multi_reduction <add>, %25, %cst_11 [0] : vector<32x64xf32> to vector<64xf32>
    %27 = vector.shape_cast %26 : vector<64xf32> to vector<1x64xf32>
    %cst_12 = arith.constant 3.125000e-02 : f32
    %28 = vector.broadcast %cst_12 : f32 to vector<1x64xf32>
    %29 = arith.mulf %24, %28 : vector<1x64xf32>
    %cst_13 = arith.constant 3.125000e-02 : f32
    %30 = vector.broadcast %cst_13 : f32 to vector<1x64xf32>
    %31 = arith.mulf %27, %30 : vector<1x64xf32>
    %32 = arith.mulf %29, %29 : vector<1x64xf32>
    %33 = arith.subf %31, %32 : vector<1x64xf32>
    %cst_14 = arith.constant 0.000000e+00 : f32
    %34 = vector.broadcast %cst_14 : f32 to vector<1x64xf32>
    %35 = arith.maximumf %33, %34 : vector<1x64xf32>
    %36 = vector.broadcast %29 : vector<1x64xf32> to vector<32x64xf32>
    %37 = arith.subf %22, %36 : vector<32x64xf32>
    %cst_15 = arith.constant 9.99999974E-6 : f32
    %38 = vector.broadcast %cst_15 : f32 to vector<1x64xf32>
    %39 = arith.addf %35, %38 : vector<1x64xf32>
    %40 = math.rsqrt %39 : vector<1x64xf32>
    %41 = vector.broadcast %40 : vector<1x64xf32> to vector<32x64xf32>
    %42 = arith.mulf %37, %41 : vector<32x64xf32>
    %c0_16 = arith.constant 0 : index
    %c0_17 = arith.constant 0 : index
    %43 = vector.load %arg6[%c0_16, %c0_17] : memref<1x64xf32, #tpu.memory_space<vmem>>, vector<1x64xf32>
    %44 = vector.broadcast %43 : vector<1x64xf32> to vector<32x64xf32>
    %45 = arith.mulf %42, %44 : vector<32x64xf32>
    %c0_18 = arith.constant 0 : index
    %c0_19 = arith.constant 0 : index
    %46 = vector.load %arg7[%c0_18, %c0_19] : memref<1x64xf32, #tpu.memory_space<vmem>>, vector<1x64xf32>
    %47 = vector.broadcast %46 : vector<1x64xf32> to vector<32x64xf32>
    %48 = arith.addf %45, %47 : vector<32x64xf32>
    %cst_20 = arith.constant 0.000000e+00 : f32
    %49 = vector.broadcast %cst_20 : f32 to vector<32x64xf32>
    %50 = arith.maximumf %48, %49 : vector<32x64xf32>
    %51 = arith.truncf %50 : vector<32x64xf32> to vector<32x64xbf16>
    %c0_21 = arith.constant 0 : index
    %c0_22 = arith.constant 0 : index
    %52 = vector.load %arg10[%c0_21, %c0_22] : memref<64x64xbf16, #tpu.memory_space<vmem>>, vector<64x64xbf16>
    %cst_23 = arith.constant dense<0.000000e+00> : vector<32x64xf32>
    %53 = tpu.matmul %51, %52, %cst_23 {dimension_numbers = #tpu.dot_dimension_numbers<[1], [0], [0], [1], [0, 0, 1, 1], [], []>} : vector<32x64xbf16>, vector<64x64xbf16>, vector<32x64xf32> -> vector<32x64xf32>
    %54 = vector.extract_strided_slice %53 {offsets = [0, 0], sizes = [32, 32], strides = [1, 1]} : vector<32x64xf32> to vector<32x32xf32>
    %55 = vector.shape_cast %54 : vector<32x32xf32> to vector<2x16x32xf32>
    %56 = vector.extract_strided_slice %53 {offsets = [0, 32], sizes = [32, 32], strides = [1, 1]} : vector<32x64xf32> to vector<32x32xf32>
    %57 = vector.shape_cast %56 : vector<32x32xf32> to vector<2x16x32xf32>
    %58 = arith.truncf %57 : vector<2x16x32xf32> to vector<2x16x32xbf16>
    %c0_24 = arith.constant 0 : index
    %c0_25 = arith.constant 0 : index
    %59 = vector.load %arg9[%c0_24, %c0_25] : memref<16x16xbf16, #tpu.memory_space<vmem>>, vector<16x16xbf16>
    %60 = vector.shape_cast %59 : vector<16x16xbf16> to vector<1x16x16xbf16>
    %61 = vector.broadcast %60 : vector<1x16x16xbf16> to vector<2x16x16xbf16>
    "tpu.trace_start"() <{level = 10 : i32, message = "bij,bjd->bid"}> : () -> ()
    %cst_26 = arith.constant dense<0.000000e+00> : vector<2x16x32xf32>
    %62 = tpu.matmul %61, %58, %cst_26 {dimension_numbers = #tpu.dot_dimension_numbers<[2], [1], [1], [2], [0, 0, 0, 1, 1, 2], [0], [0]>} : vector<2x16x16xbf16>, vector<2x16x32xbf16>, vector<2x16x32xf32> -> vector<2x16x32xf32>
    "tpu.trace_stop"() : () -> ()
    %c0_27 = arith.constant 0 : index
    %c0_28 = arith.constant 0 : index
    %63 = vector.load %arg8[%c0_27, %c0_28] : memref<16x1xf32, #tpu.memory_space<vmem>>, vector<16x1xf32>
    %64 = vector.shape_cast %63 : vector<16x1xf32> to vector<1x16x1xf32>
    %65 = vector.broadcast %64 : vector<1x16x1xf32> to vector<2x16x32xf32>
    %66 = arith.mulf %65, %55 : vector<2x16x32xf32>
    %67 = arith.addf %66, %62 : vector<2x16x32xf32>
    %c0_29 = arith.constant 0 : index
    %c0_30 = arith.constant 0 : index
    %68 = vector.load %arg11[%c0_29, %c0_30] : memref<1x32xf32, #tpu.memory_space<vmem>>, vector<1x32xf32>
    %69 = vector.shape_cast %68 : vector<1x32xf32> to vector<1x1x32xf32>
    %70 = vector.broadcast %69 : vector<1x1x32xf32> to vector<2x16x32xf32>
    %71 = arith.addf %67, %70 : vector<2x16x32xf32>
    %72 = vector.shape_cast %71 : vector<2x16x32xf32> to vector<32x32xf32>
    %cst_31 = arith.constant dense<0.000000e+00> : vector<32xf32>
    %73 = vector.multi_reduction <add>, %72, %cst_31 [0] : vector<32x32xf32> to vector<32xf32>
    %74 = vector.shape_cast %73 : vector<32xf32> to vector<1x32xf32>
    %75 = arith.mulf %72, %72 : vector<32x32xf32>
    %cst_32 = arith.constant dense<0.000000e+00> : vector<32xf32>
    %76 = vector.multi_reduction <add>, %75, %cst_32 [0] : vector<32x32xf32> to vector<32xf32>
    %77 = vector.shape_cast %76 : vector<32xf32> to vector<1x32xf32>
    %cst_33 = arith.constant 3.125000e-02 : f32
    %78 = vector.broadcast %cst_33 : f32 to vector<1x32xf32>
    %79 = arith.mulf %74, %78 : vector<1x32xf32>
    %cst_34 = arith.constant 3.125000e-02 : f32
    %80 = vector.broadcast %cst_34 : f32 to vector<1x32xf32>
    %81 = arith.mulf %77, %80 : vector<1x32xf32>
    %82 = arith.mulf %79, %79 : vector<1x32xf32>
    %83 = arith.subf %81, %82 : vector<1x32xf32>
    %cst_35 = arith.constant 0.000000e+00 : f32
    %84 = vector.broadcast %cst_35 : f32 to vector<1x32xf32>
    %85 = arith.maximumf %83, %84 : vector<1x32xf32>
    %86 = vector.broadcast %79 : vector<1x32xf32> to vector<32x32xf32>
    %87 = arith.subf %72, %86 : vector<32x32xf32>
    %cst_36 = arith.constant 9.99999974E-6 : f32
    %88 = vector.broadcast %cst_36 : f32 to vector<1x32xf32>
    %89 = arith.addf %85, %88 : vector<1x32xf32>
    %90 = math.rsqrt %89 : vector<1x32xf32>
    %91 = vector.broadcast %90 : vector<1x32xf32> to vector<32x32xf32>
    %92 = arith.mulf %87, %91 : vector<32x32xf32>
    %c0_37 = arith.constant 0 : index
    %c0_38 = arith.constant 0 : index
    %93 = vector.load %arg12[%c0_37, %c0_38] : memref<1x32xf32, #tpu.memory_space<vmem>>, vector<1x32xf32>
    %94 = vector.broadcast %93 : vector<1x32xf32> to vector<32x32xf32>
    %95 = arith.mulf %92, %94 : vector<32x32xf32>
    %c0_39 = arith.constant 0 : index
    %c0_40 = arith.constant 0 : index
    %96 = vector.load %arg13[%c0_39, %c0_40] : memref<1x32xf32, #tpu.memory_space<vmem>>, vector<1x32xf32>
    %97 = vector.broadcast %96 : vector<1x32xf32> to vector<32x32xf32>
    %98 = arith.addf %95, %97 : vector<32x32xf32>
    %cst_41 = arith.constant 0.000000e+00 : f32
    %99 = vector.broadcast %cst_41 : f32 to vector<32x32xf32>
    %100 = arith.maximumf %98, %99 : vector<32x32xf32>
    %101 = arith.addf %0, %100 : vector<32x32xf32>
    %c0_42 = arith.constant 0 : index
    %c0_43 = arith.constant 0 : index
    %102 = vector.load %arg14[%c0_42, %c0_43] : memref<32x32xf32, #tpu.memory_space<vmem>>, vector<32x32xf32>
    tpu.vector_store %arg14[%c0_42, %c0_43], %101 {strides = array<i32>} : memref<32x32xf32, #tpu.memory_space<vmem>>, vector<32x32xf32>,
    return
  }
  func.func @transform_0(%arg0: i32) -> (i32, i32) {
    %c0_i32 = arith.constant 0 : i32
    %c0_i32_0 = arith.constant 0 : i32
    %c0_i32_1 = arith.constant 0 : i32
    return %c0_i32, %c0_i32_0 : i32, i32
  }
  func.func @transform_1(%arg0: i32) -> (i32, i32) {
    %c0_i32 = arith.constant 0 : i32
    %c0_i32_0 = arith.constant 0 : i32
    %c0_i32_1 = arith.constant 0 : i32
    return %c0_i32, %c0_i32_0 : i32, i32
  }
  func.func @transform_2(%arg0: i32) -> (i32, i32) {
    %c0_i32 = arith.constant 0 : i32
    %c0_i32_0 = arith.constant 0 : i32
    %c0_i32_1 = arith.constant 0 : i32
    return %c0_i32, %c0_i32_0 : i32, i32
  }
  func.func @transform_3(%arg0: i32) -> (i32, i32) {
    %c0_i32 = arith.constant 0 : i32
    %c0_i32_0 = arith.constant 0 : i32
    %c0_i32_1 = arith.constant 0 : i32
    return %c0_i32, %c0_i32_0 : i32, i32
  }
  func.func @transform_4(%arg0: i32) -> (i32, i32) {
    %c0_i32 = arith.constant 0 : i32
    %c0_i32_0 = arith.constant 0 : i32
    %c0_i32_1 = arith.constant 0 : i32
    return %c0_i32, %c0_i32_0 : i32, i32
  }
  func.func @transform_5(%arg0: i32) -> (i32, i32) {
    %c0_i32 = arith.constant 0 : i32
    %c0_i32_0 = arith.constant 0 : i32
    %c0_i32_1 = arith.constant 0 : i32
    return %c0_i32, %c0_i32_0 : i32, i32
  }
  func.func @transform_6(%arg0: i32) -> (i32, i32) {
    %c0_i32 = arith.constant 0 : i32
    %c0_i32_0 = arith.constant 0 : i32
    %c0_i32_1 = arith.constant 0 : i32
    return %c0_i32, %c0_i32_0 : i32, i32
  }
  func.func @transform_7(%arg0: i32) -> (i32, i32) {
    %c0_i32 = arith.constant 0 : i32
    %c0_i32_0 = arith.constant 0 : i32
    %c0_i32_1 = arith.constant 0 : i32
    return %c0_i32, %c0_i32_0 : i32, i32
  }
  func.func @transform_8(%arg0: i32) -> (i32, i32) {
    %c0_i32 = arith.constant 0 : i32
    %c0_i32_0 = arith.constant 0 : i32
    %c0_i32_1 = arith.constant 0 : i32
    return %c0_i32, %c0_i32_0 : i32, i32
  }
  func.func @transform_9(%arg0: i32) -> (i32, i32) {
    %c0_i32 = arith.constant 0 : i32
    %c0_i32_0 = arith.constant 0 : i32
    %c0_i32_1 = arith.constant 0 : i32
    return %c0_i32, %c0_i32_0 : i32, i32
  }
  func.func @transform_10(%arg0: i32) -> (i32, i32) {
    %c0_i32 = arith.constant 0 : i32
    %c0_i32_0 = arith.constant 0 : i32
    %c0_i32_1 = arith.constant 0 : i32
    return %c0_i32, %c0_i32_0 : i32, i32
  }
  func.func @transform_11(%arg0: i32) -> (i32, i32) {
    %c0_i32 = arith.constant 0 : i32
    %c0_i32_0 = arith.constant 0 : i32
    %c0_i32_1 = arith.constant 0 : i32
    return %c0_i32, %c0_i32_0 : i32, i32
  }
  func.func @transform_12(%arg0: i32) -> (i32, i32) {
    %c0_i32 = arith.constant 0 : i32
    %c0_i32_0 = arith.constant 0 : i32
    %c0_i32_1 = arith.constant 0 : i32
    return %c0_i32, %c0_i32_0 : i32, i32
  }
  func.func @transform_13(%arg0: i32) -> (i32, i32) {
    %c0_i32 = arith.constant 0 : i32
    %c0_i32_0 = arith.constant 0 : i32
    %c0_i32_1 = arith.constant 0 : i32
    return %c0_i32, %c0_i32_0 : i32, i32
  }
}

</mosaic_0001>

<llo_original>
// kernel: tpu_custom_call.1
$region0: #{tpu_custom_call.1}
  #allocation0 [shape = 'u32[]', space=smem, size = 0x4, offset = 0x4, fixed_abs, tag = 'smem constant byte address 0x4 - core index']
  #allocation1 [shape = 'u32[144,128]{1,0:T(1,128)}', space=vmem, size = 0x12000, scoped, tag = 'internal scratch']
  %s0 = inlined_call_operand.vmem [shape: f32[32,32], index: 0, kind: input, shape index: {}]
  %s1 = inlined_call_operand.vmem [shape: f32[16,1], index: 1, kind: input, shape index: {}]
  %s2 = inlined_call_operand.hbm [shape: bf16[16,16], index: 2, kind: input, shape index: {}]
  %s3 = inlined_call_operand.hbm [shape: bf16[32,128], index: 3, kind: input, shape index: {}]
  %s4 = inlined_call_operand.hbm [shape: f32[1,64], index: 4, kind: input, shape index: {}]
  %s5 = inlined_call_operand.vmem [shape: f32[1,64], index: 5, kind: input, shape index: {}]
  %s6 = inlined_call_operand.vmem [shape: f32[1,64], index: 6, kind: input, shape index: {}]
  %s7 = inlined_call_operand.vmem [shape: f32[16,1], index: 7, kind: input, shape index: {}]
  %s8 = inlined_call_operand.vmem [shape: bf16[16,16], index: 8, kind: input, shape index: {}]
  %s9 = inlined_call_operand.hbm [shape: bf16[64,64], index: 9, kind: input, shape index: {}]
  %s10 = inlined_call_operand.vmem [shape: f32[1,32], index: 10, kind: input, shape index: {}]
  %s11 = inlined_call_operand.vmem [shape: f32[1,32], index: 11, kind: input, shape index: {}]
  %s12 = inlined_call_operand.vmem [shape: f32[1,32], index: 12, kind: input, shape index: {}]
  %s13 = inlined_call_operand.hbm [shape: f32[32,32], index: 13, kind: output, shape index: {}]
  %s14 = sld [smem:[#allocation0]]
  $region78: #{tpu_custom_call.1} parent=0
    _
  %s16 = ssub.s32 1, %s14
  %s17 = scalar_select 0, %s16, %s14
  $region1: #{tpu_custom_call.1} parent=0
    #allocation2 [shape = 'u8[4096]{0}', space=vmem, size = 0x1000, scoped, tag = 'input window, operand 2, single buffered']
    #allocation3 [shape = 's32[1]{0}', space=sflag, size = 0x4, scoped, tag = 'scoped memory for tpu_custom_call.1']
    #allocation4 [shape = 's32[1]{0}', space=sflag, size = 0x4, scoped, tag = 'scoped memory for tpu_custom_call.1']
    #allocation5 [shape = 'u8[8192]{0}', space=vmem, size = 0x2000, scoped, tag = 'input window, operand 3, single buffered']
    #allocation6 [shape = 's32[1]{0}', space=sflag, size = 0x4, scoped, tag = 'scoped memory for tpu_custom_call.1']
    #allocation7 [shape = 'u8[512]{0}', space=vmem, size = 0x400, scoped, tag = 'input window, operand 4, single buffered']
    #allocation8 [shape = 'u8[16384]{0}', space=vmem, size = 0x4000, scoped, tag = 'input window, operand 9, single buffered']
    #allocation9 [shape = 's32[1]{0}', space=sflag, size = 0x4, scoped, tag = 'scoped memory for tpu_custom_call.1']
    #allocation10 [shape = 'u8[16384]{0}', space=vmem, size = 0x4000, scoped, tag = 'output window, operand 0, single buffered']
    %18 = vsyncpa [#allocation3], 0
    %19 = vsyncpa [#allocation6], 0
    %20 = vsyncpa [#allocation9], 0
    %21 = vsyncpa [#allocation4], 0
    // Predicated region
    $region2: #{tpu_custom_call.1} parent=1 // pred_check
      _
    $region3: #{tpu_custom_call.1} parent=1 // pred_check_branch
      %23 = sbr.rel (0) target = $region5
    $region4: #{tpu_custom_call.1} parent=1 // pred_region
      _
    $region5: #{tpu_custom_call.1} parent=1 // pred_fallthru
      _
    // Predicated region
    $region6: #{tpu_custom_call.1} parent=1 // pred_check
      _
    $region7: #{tpu_custom_call.1} parent=1 // pred_check_branch
      %25 = sbr.rel (0) target = $region9
    $region8: #{tpu_custom_call.1} parent=1 // pred_region
      _
    $region9: #{tpu_custom_call.1} parent=1 // pred_fallthru
      _
    // Predicated region
    $region10: #{tpu_custom_call.1} parent=1 // pred_check
      _
    $region11: #{tpu_custom_call.1} parent=1 // pred_check_branch
      %27 = sbr.rel (0) target = $region13
    $region12: #{tpu_custom_call.1} parent=1 // pred_region
      %s29 = ssub.s32 128, 128
      %30 = vsyncadd [#allocation3], %s29
      %s31 = sshll.u32 [#allocation2], 4
      %s32 = int_to_ptr.vmem [resolvable:$true] %s31
      %37 = dma.hbm_to_vmem [thread:$0]  %s2, 128, %s32, [#allocation3], 64, 64, 4
    $region13: #{tpu_custom_call.1} parent=1 // pred_fallthru
      _
    // Predicated region
    $region14: #{tpu_custom_call.1} parent=1 // pred_check
      _
    $region15: #{tpu_custom_call.1} parent=1 // pred_check_branch
      %39 = sbr.rel (0) target = $region17
    $region16: #{tpu_custom_call.1} parent=1 // pred_region
      %s41 = ssub.s32 256, 256
      %42 = vsyncadd [#allocation6], %s41
      %s43 = sshll.u32 [#allocation5], 4
      %s44 = int_to_ptr.vmem [resolvable:$true] %s43
      %49 = dma.hbm_to_vmem [thread:$0]  %s3, 256, %s44, [#allocation6], 64, 64, 4
    $region17: #{tpu_custom_call.1} parent=1 // pred_fallthru
      _
    // Predicated region
    $region18: #{tpu_custom_call.1} parent=1 // pred_check
      _
    $region19: #{tpu_custom_call.1} parent=1 // pred_check_branch
      %51 = sbr.rel (0) target = $region21
    $region20: #{tpu_custom_call.1} parent=1 // pred_region
      %s53 = ssub.s32 16, 16
      %54 = vsyncadd [#allocation6], %s53
      %s56 = sshll.u32 [#allocation7], 4
      %s57 = int_to_ptr.vmem [resolvable:$true] %s56
      %59 = dma.hbm_to_vmem [thread:$0]  %s4, 16, %s57, [#allocation6]
    $region21: #{tpu_custom_call.1} parent=1 // pred_fallthru
      _
    // Predicated region
    $region22: #{tpu_custom_call.1} parent=1 // pred_check
      _
    $region23: #{tpu_custom_call.1} parent=1 // pred_check_branch
      %61 = sbr.rel (0) target = $region25
    $region24: #{tpu_custom_call.1} parent=1 // pred_region
      _
    $region25: #{tpu_custom_call.1} parent=1 // pred_fallthru
      _
    // Predicated region
    $region26: #{tpu_custom_call.1} parent=1 // pred_check
      _
    $region27: #{tpu_custom_call.1} parent=1 // pred_check_branch
      %63 = sbr.rel (0) target = $region29
    $region28: #{tpu_custom_call.1} parent=1 // pred_region
      _
    $region29: #{tpu_custom_call.1} parent=1 // pred_fallthru
      _
    // Predicated region
    $region30: #{tpu_custom_call.1} parent=1 // pred_check
      _
    $region31: #{tpu_custom_call.1} parent=1 // pred_check_branch
      %65 = sbr.rel (0) target = $region33
    $region32: #{tpu_custom_call.1} parent=1 // pred_region
      _
    $region33: #{tpu_custom_call.1} parent=1 // pred_fallthru
      _
    // Predicated region
    $region34: #{tpu_custom_call.1} parent=1 // pred_check
      _
    $region35: #{tpu_custom_call.1} parent=1 // pred_check_branch
      %67 = sbr.rel (0) target = $region37
    $region36: #{tpu_custom_call.1} parent=1 // pred_region
      _
    $region37: #{tpu_custom_call.1} parent=1 // pred_fallthru
      _
    // Predicated region
    $region38: #{tpu_custom_call.1} parent=1 // pred_check
      _
    $region39: #{tpu_custom_call.1} parent=1 // pred_check_branch
      %69 = sbr.rel (0) target = $region41
    $region40: #{tpu_custom_call.1} parent=1 // pred_region
      %s71 = ssub.s32 512, 512
      %72 = vsyncadd [#allocation9], %s71
      %s73 = sshll.u32 [#allocation8], 4
      %s74 = int_to_ptr.vmem [resolvable:$true] %s73
      %79 = dma.hbm_to_vmem [thread:$0]  %s9, 512, %s74, [#allocation9], 64, 64, 4
    $region41: #{tpu_custom_call.1} parent=1 // pred_fallthru
      _
    // Predicated region
    $region42: #{tpu_custom_call.1} parent=1 // pred_check
      _
    $region43: #{tpu_custom_call.1} parent=1 // pred_check_branch
      %81 = sbr.rel (0) target = $region45
    $region44: #{tpu_custom_call.1} parent=1 // pred_region
      _
    $region45: #{tpu_custom_call.1} parent=1 // pred_fallthru
      _
    // Predicated region
    $region46: #{tpu_custom_call.1} parent=1 // pred_check
      _
    $region47: #{tpu_custom_call.1} parent=1 // pred_check_branch
      %83 = sbr.rel (0) target = $region49
    $region48: #{tpu_custom_call.1} parent=1 // pred_region
      _
    $region49: #{tpu_custom_call.1} parent=1 // pred_fallthru
      _
    // Predicated region
    $region50: #{tpu_custom_call.1} parent=1 // pred_check
      _
    $region51: #{tpu_custom_call.1} parent=1 // pred_check_branch
      %85 = sbr.rel (0) target = $region53
    $region52: #{tpu_custom_call.1} parent=1 // pred_region
      _
    $region53: #{tpu_custom_call.1} parent=1 // pred_fallthru
      _
    // Predicated region
    $region54: #{tpu_custom_call.1} parent=1 // pred_check
      _
    $region55: #{tpu_custom_call.1} parent=1 // pred_check_branch
      %87 = sbr.rel (0) target = $region57
    $region56: #{tpu_custom_call.1} parent=1 // pred_region
      %88 = dma.done [#allocation3], 128
    $region57: #{tpu_custom_call.1} parent=1 // pred_fallthru
      _
    // Predicated region
    $region58: #{tpu_custom_call.1} parent=1 // pred_check
      _
    $region59: #{tpu_custom_call.1} parent=1 // pred_check_branch
      %90 = sbr.rel (0) target = $region61
    $region60: #{tpu_custom_call.1} parent=1 // pred_region
      %91 = dma.done [#allocation6], 256
    $region61: #{tpu_custom_call.1} parent=1 // pred_fallthru
      _
    // Predicated region
    $region62: #{tpu_custom_call.1} parent=1 // pred_check
      _
    $region63: #{tpu_custom_call.1} parent=1 // pred_check_branch
      %93 = sbr.rel (0) target = $region65
    $region64: #{tpu_custom_call.1} parent=1 // pred_region
      %94 = dma.done [#allocation6], 16
    $region65: #{tpu_custom_call.1} parent=1 // pred_fallthru
      _
    // Predicated region
    $region66: #{tpu_custom_call.1} parent=1 // pred_check
      _
    $region67: #{tpu_custom_call.1} parent=1 // pred_check_branch
      %96 = sbr.rel (0) target = $region69
    $region68: #{tpu_custom_call.1} parent=1 // pred_region
      %97 = dma.done [#allocation9], 512
    $region69: #{tpu_custom_call.1} parent=1 // pred_fallthru
      _
    %v99 = vld [vmem:[%s0] sm:$0xff]
    %v100 = vld [vmem:[%s0 + $0x8] sm:$0xff]
    %v101 = vld [vmem:[%s0 + $0x10] sm:$0xff]
    %v102 = vld [vmem:[%s0 + $0x18] sm:$0xff]
    %v103 = vpack.c.bf16 %v100, %v99
    %v104 = vpack.c.bf16 %v102, %v101
    %v105 = vld [vmem:[#allocation5] sm:$0xf]
    %v106 = vld [vmem:[#allocation5 + $0x4] sm:$0xf]
    %v107 = vld [vmem:[#allocation5 + $0x8] sm:$0xf]
    %v108 = vld [vmem:[#allocation5 + $0xc] sm:$0xf]
    %v113 = vunpack.c.l.b16 %v105
    %v114 = vunpack.c.l.b16 %v106
    %v115 = vunpack.c.l.b16 %v107
    %v116 = vunpack.c.l.b16 %v108
    %v117 = vpack.c.b16 %v114, %v113
    %v118 = vpack.c.b16 %v116, %v115
    %vm121 = vcmask 261120
    %v123 = vsel %vm121, %v103, 0
    %v126 = vsel %vm121, %v104, 0
    %128 = vmatprep.subr.bf16.mxu0 0
    %129 = vmatpush1.bf16.msra.mxu0 0
    %130 = vmatprep.subr.bf16.mxu0 0
    %131 = vmatpush1.bf16.msra.mxu0 0
    %132 = vmatprep.subr.bf16.mxu0 0
    %133 = vmatpush1.bf16.msra.mxu0 0
    %134 = vmatprep.subr.bf16.mxu0 0
    %135 = vmatpush1.bf16.msra.mxu0 0
    %136 = vmatprep.subr.bf16.mxu0 0
    %137 = vmatpush1.bf16.msra.mxu0 0
    %138 = vmatprep.subr.bf16.mxu0 0
    %139 = vmatpush1.bf16.msra.mxu0 0
    %140 = vmatprep.subr.bf16.mxu0 0
    %141 = vmatpush1.bf16.msra.mxu0 %v118
    %142 = vmatprep.subr.bf16.mxu0 0
    %143 = vmatpush1.bf16.msra.mxu0 %v117
    %144 = vmatprep.subr.bf16.mxu0 0
    %145 = vmatpush2.bf16.msra.mxu0 0
    %146 = vmatprep.subr.bf16.mxu0 0
    %147 = vmatpush2.bf16.msra.mxu0 0
    %148 = vmatprep.subr.bf16.mxu0 0
    %149 = vmatpush2.bf16.msra.mxu0 0
    %150 = vmatprep.subr.bf16.mxu0 0
    %151 = vmatpush2.bf16.msra.mxu0 0
    %152 = vmatprep.subr.bf16.mxu0 0
    %153 = vmatpush2.bf16.msra.mxu0 0
    %154 = vmatprep.subr.bf16.mxu0 0
    %155 = vmatpush2.bf16.msra.mxu0 0
    %156 = vmatprep.subr.bf16.mxu0 0
    %157 = vmatpush2.bf16.msra.mxu0 0
    %158 = vmatprep.subr.bf16.mxu0 0
    %159 = vmatpush2.bf16.msra.mxu0 0
    %160 = vmatprep.mubr.bf16.mxu0 0
    %161 = vmatmul.mubr.bf16.gmra.mxu0 %v123
    %v162 = vpop.f32.mrf.mxu0
    %v163 = vadd.f32 0.0, %v162
    %v164 = vpop.f32.mrf.mxu0
    %v165 = vpop.f32.mrf.mxu0
    %v166 = vadd.f32 0.0, %v165
    %v167 = vpop.f32.mrf.mxu0
    %168 = vmatprep.mubr.bf16.mxu0 0
    %169 = vmatmul.mubr.bf16.gmra.mxu0 %v126
    %v170 = vpop.f32.mrf.mxu0
    %v171 = vadd.f32 0.0, %v170
    %v172 = vpop.f32.mrf.mxu0
    %v173 = vpop.f32.mrf.mxu0
    %v174 = vadd.f32 0.0, %v173
    %v175 = vpop.f32.mrf.mxu0
    %176 = vdwg.mxu0
    %v177 = vpack.c.bf16 %v166, %v163
    %v178 = vpack.c.bf16 %v174, %v171
    %v179 = vld [vmem:[#allocation2] sm:$0xf]
    %v180 = vld [vmem:[#allocation2 + $0x4] sm:$0xf]
    %v183 = vunpack.c.l.b16 %v179
    %v184 = vunpack.c.l.b16 %v180
    %v185 = vpack.c.b16 %v184, %v183
    %187 = vrot.lane.b32.xlu0 %v177, 64
    %v188 = vpop.permute.xlu0 %187
    %vm190 = vcmask 130048
    %v192 = vsel %vm190, %v185, 0
    %194 = vmatprep.subr.bf16.mxu0 0
    %195 = vmatpush1.bf16.msra.mxu0 0
    %196 = vmatprep.subr.bf16.mxu0 0
    %197 = vmatpush1.bf16.msra.mxu0 0
    %198 = vmatprep.subr.bf16.mxu0 0
    %199 = vmatpush1.bf16.msra.mxu0 0
    %200 = vmatprep.subr.bf16.mxu0 0
    %201 = vmatpush1.bf16.msra.mxu0 0
    %202 = vmatprep.subr.bf16.mxu0 0
    %203 = vmatpush1.bf16.msra.mxu0 0
    %204 = vmatprep.subr.bf16.mxu0 0
    %205 = vmatpush1.bf16.msra.mxu0 0
    %206 = vmatprep.subr.bf16.mxu0 0
    %207 = vmatpush1.bf16.msra.mxu0 0
    %208 = vmatprep.subr.bf16.mxu0 0
    %209 = vmatpush1.bf16.msra.mxu0 %v188
    %210 = vmatprep.subr.bf16.mxu0 0
    %211 = vmatpush2.bf16.msra.mxu0 0
    %212 = vmatprep.subr.bf16.mxu0 0
    %213 = vmatpush2.bf16.msra.mxu0 0
    %214 = vmatprep.subr.bf16.mxu0 0
    %215 = vmatpush2.bf16.msra.mxu0 0
    %216 = vmatprep.subr.bf16.mxu0 0
    %217 = vmatpush2.bf16.msra.mxu0 0
    %218 = vmatprep.subr.bf16.mxu0 0
    %219 = vmatpush2.bf16.msra.mxu0 0
    %220 = vmatprep.subr.bf16.mxu0 0
    %221 = vmatpush2.bf16.msra.mxu0 0
    %222 = vmatprep.subr.bf16.mxu0 0
    %223 = vmatpush2.bf16.msra.mxu0 0
    %224 = vmatprep.subr.bf16.mxu0 0
    %225 = vmatpush2.bf16.msra.mxu0 0
    %226 = vmatprep.mubr.bf16.mxu0 0
    %227 = vmatmul.mubr.bf16.gmra.mxu0 %v192
    %v228 = vpop.f32.mrf.mxu0
    %v229 = vadd.f32 0.0, %v228
    %v230 = vpop.f32.mrf.mxu0
    %v231 = vpop.f32.mrf.mxu0
    %v232 = vadd.f32 0.0, %v231
    %v233 = vpop.f32.mrf.mxu0
    %234 = vdwg.mxu0
    %236 = vrot.lane.b32.xlu0 %v178, 64
    %v237 = vpop.permute.xlu0 %236
    %239 = vmatprep.subr.bf16.mxu0 0
    %240 = vmatpush1.bf16.msra.mxu0 0
    %241 = vmatprep.subr.bf16.mxu0 0
    %242 = vmatpush1.bf16.msra.mxu0 0
    %243 = vmatprep.subr.bf16.mxu0 0
    %244 = vmatpush1.bf16.msra.mxu0 0
    %245 = vmatprep.subr.bf16.mxu0 0
    %246 = vmatpush1.bf16.msra.mxu0 0
    %247 = vmatprep.subr.bf16.mxu0 0
    %248 = vmatpush1.bf16.msra.mxu0 0
    %249 = vmatprep.subr.bf16.mxu0 0
    %250 = vmatpush1.bf16.msra.mxu0 0
    %251 = vmatprep.subr.bf16.mxu0 0
    %252 = vmatpush1.bf16.msra.mxu0 0
    %253 = vmatprep.subr.bf16.mxu0 0
    %254 = vmatpush1.bf16.msra.mxu0 %v237
    %255 = vmatprep.subr.bf16.mxu0 0
    %256 = vmatpush2.bf16.msra.mxu0 0
    %257 = vmatprep.subr.bf16.mxu0 0
    %258 = vmatpush2.bf16.msra.mxu0 0
    %259 = vmatprep.subr.bf16.mxu0 0
    %260 = vmatpush2.bf16.msra.mxu0 0
    %261 = vmatprep.subr.bf16.mxu0 0
    %262 = vmatpush2.bf16.msra.mxu0 0
    %263 = vmatprep.subr.bf16.mxu0 0
    %264 = vmatpush2.bf16.msra.mxu0 0
    %265 = vmatprep.subr.bf16.mxu0 0
    %266 = vmatpush2.bf16.msra.mxu0 0
    %267 = vmatprep.subr.bf16.mxu0 0
    %268 = vmatpush2.bf16.msra.mxu0 0
    %269 = vmatprep.subr.bf16.mxu0 0
    %270 = vmatpush2.bf16.msra.mxu0 0
    %271 = vmatprep.mubr.bf16.mxu0 0
    %272 = vmatmul.mubr.bf16.gmra.mxu0 %v192
    %v273 = vpop.f32.mrf.mxu0
    %v274 = vadd.f32 0.0, %v273
    %v275 = vpop.f32.mrf.mxu0
    %v276 = vpop.f32.mrf.mxu0
    %v277 = vadd.f32 0.0, %v276
    %v278 = vpop.f32.mrf.mxu0
    %279 = vdwg.mxu0
    %v280 = vld [vmem:[%s1] sm:$0xff]
    %v281 = vld [vmem:[%s1 + $0x8] sm:$0xff]
    %283 = vset.pattern.permute.xlu0 0
    %284 = vperm.xlu0 %283, %v280
    %v285 = vpop.permute.xlu0 %284
    %288 = vset.pattern.permute.xlu0 0
    %289 = vperm.xlu0 %288, %v281
    %v290 = vpop.permute.xlu0 %289
    %v292 = vmul.f32 %v285, %v163
    %v293 = vmul.f32 %v290, %v166
    %v294 = vmul.f32 %v285, %v171
    %v295 = vmul.f32 %v290, %v174
    %v296 = vadd.f32 %v292, %v229
    %v297 = vadd.f32 %v293, %v232
    %v298 = vadd.f32 %v294, %v274
    %v299 = vadd.f32 %v295, %v277
    %v300 = vld [vmem:[#allocation7] sm:$0x1]
    %v302 = vlaneseq
    %v303 = vshrl.u32 %v302, 7
    %v304 = vsub.s32 0, %v303
    %v305 = vrot.slane %v300, %v304
    %v307 = vadd.f32 %v296, %v305
    %v308 = vadd.f32 %v297, %v305
    %v309 = vadd.f32 %v298, %v305
    %v310 = vadd.f32 %v299, %v305
    %vm311 = vcmask 523264
    %v312 = vsel %vm311, %v307, 0.0
    %v313 = vsel %vm311, %v308, 0.0
    %v314 = vadd.f32 %v312, %v313
    %v315 = vsel %vm311, %v309, 0.0
    %v316 = vadd.f32 %v314, %v315
    %v317 = vsel %vm311, %v310, 0.0
    %v318 = vadd.f32 %v316, %v317
    %v319 = vrot.slane %v318, 4
    %v320 = vadd.f32 %v318, %v319
    %v321 = vrot.slane %v320, 2
    %v322 = vadd.f32 %v320, %v321
    %v323 = vrot.slane %v322, 1
    %v324 = vadd.f32 %v322, %v323
    %v325 = vmul.f32 %v307, %v307
    %v326 = vmul.f32 %v308, %v308
    %v327 = vmul.f32 %v309, %v309
    %v328 = vmul.f32 %v310, %v310
    %v329 = vsel %vm311, %v325, 0.0
    %v330 = vsel %vm311, %v326, 0.0
    %v331 = vadd.f32 %v329, %v330
    %v332 = vsel %vm311, %v327, 0.0
    %v333 = vadd.f32 %v331, %v332
    %v334 = vsel %vm311, %v328, 0.0
    %v335 = vadd.f32 %v333, %v334
    %v336 = vrot.slane %v335, 4
    %v337 = vadd.f32 %v335, %v336
    %v338 = vrot.slane %v337, 2
    %v339 = vadd.f32 %v337, %v338
    %v340 = vrot.slane %v339, 1
    %v341 = vadd.f32 %v339, %v340
    %v342 = vmul.f32 %v324, 0.03125
    %v343 = vmul.f32 %v341, 0.03125
    %v344 = vmul.f32 %v342, %v342
    %v345 = vsub.f32 %v343, %v344
    %v346 = vmax.f32 %v345, 0.0
    %v347 = vsub.f32 %v307, %v342
    %v348 = vsub.f32 %v308, %v342
    %v349 = vsub.f32 %v309, %v342
    %v350 = vsub.f32 %v310, %v342
    %v351 = vadd.f32 %v346, 1e-05
    %v352 = vrsqrt.pop %v351
    %v353 = vmul.f32 %v347, %v352
    %v354 = vmul.f32 %v348, %v352
    %v355 = vmul.f32 %v349, %v352
    %v356 = vmul.f32 %v350, %v352
    %v357 = vld [vmem:[%s5] sm:$0x1]
    %v359 = vlaneseq
    %v360 = vshrl.u32 %v359, 7
    %v361 = vsub.s32 0, %v360
    %v362 = vrot.slane %v357, %v361
    %v364 = vmul.f32 %v353, %v362
    %v365 = vmul.f32 %v354, %v362
    %v366 = vmul.f32 %v355, %v362
    %v367 = vmul.f32 %v356, %v362
    %v368 = vld [vmem:[%s6] sm:$0x1]
    %v370 = vlaneseq
    %v371 = vshrl.u32 %v370, 7
    %v372 = vsub.s32 0, %v371
    %v373 = vrot.slane %v368, %v372
    %v375 = vadd.f32 %v364, %v373
    %v376 = vadd.f32 %v365, %v373
    %v377 = vadd.f32 %v366, %v373
    %v378 = vadd.f32 %v367, %v373
    %v379 = vmax.f32 %v375, 0.0
    %v380 = vmax.f32 %v376, 0.0
    %v381 = vmax.f32 %v377, 0.0
    %v382 = vmax.f32 %v378, 0.0
    %v383 = vpack.c.bf16 %v380, %v379
    %v384 = vpack.c.bf16 %v382, %v381
    %v385 = vld [vmem:[#allocation8] sm:$0xf]
    %v386 = vld [vmem:[#allocation8 + $0x4] sm:$0xf]
    %v387 = vld [vmem:[#allocation8 + $0x8] sm:$0xf]
    %v388 = vld [vmem:[#allocation8 + $0xc] sm:$0xf]
    %v389 = vld [vmem:[#allocation8 + $0x10] sm:$0xf]
    %v390 = vld [vmem:[#allocation8 + $0x14] sm:$0xf]
    %v391 = vld [vmem:[#allocation8 + $0x18] sm:$0xf]
    %v392 = vld [vmem:[#allocation8 + $0x1c] sm:$0xf]
    %v401 = vunpack.c.l.b16 %v385
    %v402 = vunpack.c.l.b16 %v386
    %v403 = vunpack.c.l.b16 %v387
    %v404 = vunpack.c.l.b16 %v388
    %v405 = vunpack.c.l.b16 %v389
    %v406 = vunpack.c.l.b16 %v390
    %v407 = vunpack.c.l.b16 %v391
    %v408 = vunpack.c.l.b16 %v392
    %v409 = vpack.c.b16 %v402, %v401
    %v410 = vpack.c.b16 %v404, %v403
    %v411 = vpack.c.b16 %v406, %v405
    %v412 = vpack.c.b16 %v408, %v407
    %v418 = vsel %vm311, %v383, 0
    %v421 = vsel %vm311, %v384, 0
    %423 = vmatprep.subr.bf16.mxu0 0
    %424 = vmatpush1.bf16.msra.mxu0 0
    %425 = vmatprep.subr.bf16.mxu0 0
    %426 = vmatpush1.bf16.msra.mxu0 0
    %427 = vmatprep.subr.bf16.mxu0 0
    %428 = vmatpush1.bf16.msra.mxu0 0
    %429 = vmatprep.subr.bf16.mxu0 0
    %430 = vmatpush1.bf16.msra.mxu0 0
    %431 = vmatprep.subr.bf16.mxu0 0
    %432 = vmatpush1.bf16.msra.mxu0 %v412
    %433 = vmatprep.subr.bf16.mxu0 0
    %434 = vmatpush1.bf16.msra.mxu0 %v411
    %435 = vmatprep.subr.bf16.mxu0 0
    %436 = vmatpush1.bf16.msra.mxu0 %v410
    %437 = vmatprep.subr.bf16.mxu0 0
    %438 = vmatpush1.bf16.msra.mxu0 %v409
    %439 = vmatprep.subr.bf16.mxu0 0
    %440 = vmatpush2.bf16.msra.mxu0 0
    %441 = vmatprep.subr.bf16.mxu0 0
    %442 = vmatpush2.bf16.msra.mxu0 0
    %443 = vmatprep.subr.bf16.mxu0 0
    %444 = vmatpush2.bf16.msra.mxu0 0
    %445 = vmatprep.subr.bf16.mxu0 0
    %446 = vmatpush2.bf16.msra.mxu0 0
    %447 = vmatprep.subr.bf16.mxu0 0
    %448 = vmatpush2.bf16.msra.mxu0 0
    %449 = vmatprep.subr.bf16.mxu0 0
    %450 = vmatpush2.bf16.msra.mxu0 0
    %451 = vmatprep.subr.bf16.mxu0 0
    %452 = vmatpush2.bf16.msra.mxu0 0
    %453 = vmatprep.subr.bf16.mxu0 0
    %454 = vmatpush2.bf16.msra.mxu0 0
    %455 = vmatprep.mubr.bf16.mxu0 0
    %456 = vmatmul.mubr.bf16.gmra.mxu0 %v418
    %v457 = vpop.f32.mrf.mxu0
    %v458 = vadd.f32 0.0, %v457
    %v459 = vpop.f32.mrf.mxu0
    %v460 = vpop.f32.mrf.mxu0
    %v461 = vadd.f32 0.0, %v460
    %v462 = vpop.f32.mrf.mxu0
    %463 = vmatprep.mubr.bf16.mxu0 0
    %464 = vmatmul.mubr.bf16.gmra.mxu0 %v421
    %v465 = vpop.f32.mrf.mxu0
    %v466 = vadd.f32 0.0, %v465
    %v467 = vpop.f32.mrf.mxu0
    %v468 = vpop.f32.mrf.mxu0
    %v469 = vadd.f32 0.0, %v468
    %v470 = vpop.f32.mrf.mxu0
    %471 = vdwg.mxu0
    %v472 = vpack.c.bf16 %v461, %v458
    %v473 = vpack.c.bf16 %v469, %v466
    %v474 = vld [vmem:[%s8] sm:$0xf]
    %v475 = vld [vmem:[%s8 + $0x4] sm:$0xf]
    %v478 = vunpack.c.l.b16 %v474
    %v479 = vunpack.c.l.b16 %v475
    %v480 = vpack.c.b16 %v479, %v478
    %482 = vrot.lane.b32.xlu0 %v472, 96
    %v483 = vpop.permute.xlu0 %482
    %v486 = vsel %vm190, %v480, 0
    %488 = vmatprep.subr.bf16.mxu0 0
    %489 = vmatpush1.bf16.msra.mxu0 0
    %490 = vmatprep.subr.bf16.mxu0 0
    %491 = vmatpush1.bf16.msra.mxu0 0
    %492 = vmatprep.subr.bf16.mxu0 0
    %493 = vmatpush1.bf16.msra.mxu0 0
    %494 = vmatprep.subr.bf16.mxu0 0
    %495 = vmatpush1.bf16.msra.mxu0 0
    %496 = vmatprep.subr.bf16.mxu0 0
    %497 = vmatpush1.bf16.msra.mxu0 0
    %498 = vmatprep.subr.bf16.mxu0 0
    %499 = vmatpush1.bf16.msra.mxu0 0
    %500 = vmatprep.subr.bf16.mxu0 0
    %501 = vmatpush1.bf16.msra.mxu0 0
    %502 = vmatprep.subr.bf16.mxu0 0
    %503 = vmatpush1.bf16.msra.mxu0 %v483
    %504 = vmatprep.subr.bf16.mxu0 0
    %505 = vmatpush2.bf16.msra.mxu0 0
    %506 = vmatprep.subr.bf16.mxu0 0
    %507 = vmatpush2.bf16.msra.mxu0 0
    %508 = vmatprep.subr.bf16.mxu0 0
    %509 = vmatpush2.bf16.msra.mxu0 0
    %510 = vmatprep.subr.bf16.mxu0 0
    %511 = vmatpush2.bf16.msra.mxu0 0
    %512 = vmatprep.subr.bf16.mxu0 0
    %513 = vmatpush2.bf16.msra.mxu0 0
    %514 = vmatprep.subr.bf16.mxu0 0
    %515 = vmatpush2.bf16.msra.mxu0 0
    %516 = vmatprep.subr.bf16.mxu0 0
    %517 = vmatpush2.bf16.msra.mxu0 0
    %518 = vmatprep.subr.bf16.mxu0 0
    %519 = vmatpush2.bf16.msra.mxu0 0
    %520 = vmatprep.mubr.bf16.mxu0 0
    %521 = vmatmul.mubr.bf16.gmra.mxu0 %v486
    %v522 = vpop.f32.mrf.mxu0
    %v523 = vadd.f32 0.0, %v522
    %v524 = vpop.f32.mrf.mxu0
    %v525 = vpop.f32.mrf.mxu0
    %v526 = vadd.f32 0.0, %v525
    %v527 = vpop.f32.mrf.mxu0
    %528 = vdwg.mxu0
    %530 = vrot.lane.b32.xlu0 %v473, 96
    %v531 = vpop.permute.xlu0 %530
    %533 = vmatprep.subr.bf16.mxu0 0
    %534 = vmatpush1.bf16.msra.mxu0 0
    %535 = vmatprep.subr.bf16.mxu0 0
    %536 = vmatpush1.bf16.msra.mxu0 0
    %537 = vmatprep.subr.bf16.mxu0 0
    %538 = vmatpush1.bf16.msra.mxu0 0
    %539 = vmatprep.subr.bf16.mxu0 0
    %540 = vmatpush1.bf16.msra.mxu0 0
    %541 = vmatprep.subr.bf16.mxu0 0
    %542 = vmatpush1.bf16.msra.mxu0 0
    %543 = vmatprep.subr.bf16.mxu0 0
    %544 = vmatpush1.bf16.msra.mxu0 0
    %545 = vmatprep.subr.bf16.mxu0 0
    %546 = vmatpush1.bf16.msra.mxu0 0
    %547 = vmatprep.subr.bf16.mxu0 0
    %548 = vmatpush1.bf16.msra.mxu0 %v531
    %549 = vmatprep.subr.bf16.mxu0 0
    %550 = vmatpush2.bf16.msra.mxu0 0
    %551 = vmatprep.subr.bf16.mxu0 0
    %552 = vmatpush2.bf16.msra.mxu0 0
    %553 = vmatprep.subr.bf16.mxu0 0
    %554 = vmatpush2.bf16.msra.mxu0 0
    %555 = vmatprep.subr.bf16.mxu0 0
    %556 = vmatpush2.bf16.msra.mxu0 0
    %557 = vmatprep.subr.bf16.mxu0 0
    %558 = vmatpush2.bf16.msra.mxu0 0
    %559 = vmatprep.subr.bf16.mxu0 0
    %560 = vmatpush2.bf16.msra.mxu0 0
    %561 = vmatprep.subr.bf16.mxu0 0
    %562 = vmatpush2.bf16.msra.mxu0 0
    %563 = vmatprep.subr.bf16.mxu0 0
    %564 = vmatpush2.bf16.msra.mxu0 0
    %565 = vmatprep.mubr.bf16.mxu0 0
    %566 = vmatmul.mubr.bf16.gmra.mxu0 %v486
    %v567 = vpop.f32.mrf.mxu0
    %v568 = vadd.f32 0.0, %v567
    %v569 = vpop.f32.mrf.mxu0
    %v570 = vpop.f32.mrf.mxu0
    %v571 = vadd.f32 0.0, %v570
    %v572 = vpop.f32.mrf.mxu0
    %573 = vdwg.mxu0
    %v574 = vld [vmem:[%s7] sm:$0xff]
    %v575 = vld [vmem:[%s7 + $0x8] sm:$0xff]
    %577 = vset.pattern.permute.xlu0 0
    %578 = vperm.xlu0 %577, %v574
    %v579 = vpop.permute.xlu0 %578
    %582 = vset.pattern.permute.xlu0 0
    %583 = vperm.xlu0 %582, %v575
    %v584 = vpop.permute.xlu0 %583
    %v586 = vmul.f32 %v579, %v458
    %v587 = vmul.f32 %v584, %v461
    %v588 = vmul.f32 %v579, %v466
    %v589 = vmul.f32 %v584, %v469
    %v590 = vadd.f32 %v586, %v523
    %v591 = vadd.f32 %v587, %v526
    %v592 = vadd.f32 %v588, %v568
    %v593 = vadd.f32 %v589, %v571
    %v594 = vld [vmem:[%s10] sm:$0x1]
    %v596 = vlaneseq
    %v597 = vshrl.u32 %v596, 7
    %v598 = vsub.s32 0, %v597
    %v599 = vrot.slane %v594, %v598
    %v601 = vadd.f32 %v590, %v599
    %v602 = vadd.f32 %v591, %v599
    %v603 = vadd.f32 %v592, %v599
    %v604 = vadd.f32 %v593, %v599
    %v605 = vsel %vm121, %v601, 0.0
    %v606 = vsel %vm121, %v602, 0.0
    %v607 = vadd.f32 %v605, %v606
    %v608 = vsel %vm121, %v603, 0.0
    %v609 = vadd.f32 %v607, %v608
    %v610 = vsel %vm121, %v604, 0.0
    %v611 = vadd.f32 %v609, %v610
    %v612 = vrot.slane %v611, 4
    %v613 = vadd.f32 %v611, %v612
    %v614 = vrot.slane %v613, 2
    %v615 = vadd.f32 %v613, %v614
    %v616 = vrot.slane %v615, 1
    %v617 = vadd.f32 %v615, %v616
    %v618 = vmul.f32 %v601, %v601
    %v619 = vmul.f32 %v602, %v602
    %v620 = vmul.f32 %v603, %v603
    %v621 = vmul.f32 %v604, %v604
    %v622 = vsel %vm121, %v618, 0.0
    %v623 = vsel %vm121, %v619, 0.0
    %v624 = vadd.f32 %v622, %v623
    %v625 = vsel %vm121, %v620, 0.0
    %v626 = vadd.f32 %v624, %v625
    %v627 = vsel %vm121, %v621, 0.0
    %v628 = vadd.f32 %v626, %v627
    %v629 = vrot.slane %v628, 4
    %v630 = vadd.f32 %v628, %v629
    %v631 = vrot.slane %v630, 2
    %v632 = vadd.f32 %v630, %v631
    %v633 = vrot.slane %v632, 1
    %v634 = vadd.f32 %v632, %v633
    %v635 = vmul.f32 %v617, 0.03125
    %v636 = vmul.f32 %v634, 0.03125
    %v637 = vmul.f32 %v635, %v635
    %v638 = vsub.f32 %v636, %v637
    %v639 = vmax.f32 %v638, 0.0
    %v640 = vsub.f32 %v601, %v635
    %v641 = vsub.f32 %v602, %v635
    %v642 = vsub.f32 %v603, %v635
    %v643 = vsub.f32 %v604, %v635
    %v644 = vadd.f32 %v639, 1e-05
    %v645 = vrsqrt.pop %v644
    %v646 = vmul.f32 %v640, %v645
    %v647 = vmul.f32 %v641, %v645
    %v648 = vmul.f32 %v642, %v645
    %v649 = vmul.f32 %v643, %v645
    %v650 = vld [vmem:[%s11] sm:$0x1]
    %v652 = vlaneseq
    %v653 = vshrl.u32 %v652, 7
    %v654 = vsub.s32 0, %v653
    %v655 = vrot.slane %v650, %v654
    %v657 = vmul.f32 %v646, %v655
    %v658 = vmul.f32 %v647, %v655
    %v659 = vmul.f32 %v648, %v655
    %v660 = vmul.f32 %v649, %v655
    %v661 = vld [vmem:[%s12] sm:$0x1]
    %v663 = vlaneseq
    %v664 = vshrl.u32 %v663, 7
    %v665 = vsub.s32 0, %v664
    %v666 = vrot.slane %v661, %v665
    %v668 = vadd.f32 %v657, %v666
    %v669 = vadd.f32 %v658, %v666
    %v670 = vadd.f32 %v659, %v666
    %v671 = vadd.f32 %v660, %v666
    %v672 = vmax.f32 %v668, 0.0
    %v673 = vmax.f32 %v669, 0.0
    %v674 = vmax.f32 %v670, 0.0
    %v675 = vmax.f32 %v671, 0.0
    %v676 = vadd.f32 %v99, %v672
    %v677 = vadd.f32 %v100, %v673
    %v678 = vadd.f32 %v101, %v674
    %v679 = vadd.f32 %v102, %v675
    %680 = vst.msk [vmem:[#allocation10] sm:$0xff] %vm121, %v676
    %681 = vst.msk [vmem:[#allocation10 + $0x8] sm:$0xff] %vm121, %v677
    %682 = vst.msk [vmem:[#allocation10 + $0x10] sm:$0xff] %vm121, %v678
    %683 = vst.msk [vmem:[#allocation10 + $0x18] sm:$0xff] %vm121, %v679
    // Predicated region
    $region70: #{tpu_custom_call.1} parent=1 // pred_check
      _
    $region71: #{tpu_custom_call.1} parent=1 // pred_check_branch
      %685 = sbr.rel (0) target = $region73
    $region72: #{tpu_custom_call.1} parent=1 // pred_region
      %s687 = ssub.s32 512, 512
      %688 = vsyncadd [#allocation4], %s687
      %s689 = sshll.u32 [#allocation10], 4
      %s690 = int_to_ptr.vmem [resolvable:$true] %s689
      %695 = dma.vmem_to_hbm [thread:$0]  %s690, 512, %s13, [#allocation4], 128, 128, 8
    $region73: #{tpu_custom_call.1} parent=1 // pred_fallthru
      _
    // Predicated region
    $region74: #{tpu_custom_call.1} parent=1 // pred_check
      _
    $region75: #{tpu_custom_call.1} parent=1 // pred_check_branch
      %697 = sbr.rel (0) target = $region77
    $region76: #{tpu_custom_call.1} parent=1 // pred_region
      %698 = dma.done [#allocation4], 512
    $region77: #{tpu_custom_call.1} parent=1 // pred_fallthru
      _
    %699 = vsyncpa [#allocation3], 1
    %700 = vsyncpa [#allocation6], 1
    %701 = vsyncpa [#allocation9], 1
    %702 = vsyncpa [#allocation4], 1

</llo_original>
